<compile_context>
chip_gen: v6e
topology: v6e:2x2x1
jax: 0.10.0
libtpu: 0.0.40
codegen_flags: <defaults>
</compile_context>

<pallas_src>
import math
import functools

import jax
import jax.numpy as jnp
from jax.experimental import pallas as pl
from jax.experimental.pallas import tpu as pltpu

BATCH = 10   # forced by the module's v.resize(10, 1, net_width)
PAD = 128    # lane width


def critic_kernel(x_ref, w_ref, b_ref, out_ref, *, state_dim):
    # x_ref: (BATCH, state_dim) f32   w_ref: (3, 128, 128) bf16
    # b_ref: (3, BATCH, 128) f32      out_ref: (BATCH, 128) f32
    x = x_ref[...].astype(jnp.bfloat16)
    h1 = (
        jnp.dot(x, w_ref[0, :state_dim, :], preferred_element_type=jnp.float32)
        + b_ref[0]
    )
    v1 = jnp.tanh(h1).astype(jnp.bfloat16)
    h2 = jnp.dot(v1, w_ref[1], preferred_element_type=jnp.float32) + b_ref[1]
    v2 = jnp.tanh(h2).astype(jnp.bfloat16)
    out_ref[...] = (
        jnp.dot(v2, w_ref[2], preferred_element_type=jnp.float32) + b_ref[2]
    )


def _pad2(m, rows, cols):
    return jnp.zeros((rows, cols), jnp.float32).at[: m.shape[0], : m.shape[1]].set(m)


def pack_params(params):
    """Fold the seq==1 attentions into the adjacent linears; pack into 2 operands."""
    # attention1 ∘ C2  (softmax over a single key == 1 -> out_proj(v_proj(.)))
    wa = (params["wv1"] @ params["wo1"]) @ params["w2"]
    ba = (params["bv1"] @ params["wo1"] + params["bo1"]) @ params["w2"] + params["b2"]
    # attention2 ∘ C3
    wb = (params["wv2"] @ params["wo2"]) @ params["w3"]
    bb = (params["bv2"] @ params["wo2"] + params["bo2"]) @ params["w3"] + params["b3"]

    w_stack = jnp.stack(
        [_pad2(params["w1"], PAD, PAD), _pad2(wa, PAD, PAD), _pad2(wb, PAD, PAD)]
    ).astype(jnp.bfloat16)                                       # (3, 128, 128) bf16

    def bias_block(b):
        row = jnp.zeros((1, PAD), jnp.float32).at[:, : b.shape[1]].set(b)
        return jnp.broadcast_to(row, (BATCH, PAD))

    b_stack = jnp.stack(
        [bias_block(params["b1"]), bias_block(ba), bias_block(bb)]
    )                                                            # (3, BATCH, 128) f32
    return w_stack, b_stack


@jax.jit
def critic_forward(state, w_stack, b_stack):
    """Returns the lane-dense (BATCH, 128) block; the critic value is column 0."""
    kernel = functools.partial(critic_kernel, state_dim=state.shape[1])
    return pl.pallas_call(
        kernel,
        out_shape=jax.ShapeDtypeStruct((BATCH, PAD), jnp.float32),
        in_specs=[pl.BlockSpec(memory_space=pltpu.MemorySpace.VMEM)] * 3,
        out_specs=pl.BlockSpec(memory_space=pltpu.MemorySpace.VMEM),
    )(state, w_stack, b_stack)


def init_params(key, state_dim, net_width):
    """Deterministic synthetic parameters matching the torch module's shapes."""
    def linear(k, fan_in, fan_out):
        bound = 1.0 / math.sqrt(fan_in)
        kw, kb = jax.random.split(k)
        w = jax.random.uniform(kw, (fan_in, fan_out), jnp.float32, -bound, bound)
        b = jax.random.uniform(kb, (1, fan_out), jnp.float32, -bound, bound)
        return w, b

    ks = jax.random.split(key, 11)
    p = {}
    p["w1"], p["b1"] = linear(ks[0], state_dim, net_width)          # C1
    p["wq1"], p["bq1"] = linear(ks[1], net_width, net_width)        # attention1 q proj
    p["wk1"], p["bk1"] = linear(ks[2], net_width, net_width)        # attention1 k proj
    p["wv1"], p["bv1"] = linear(ks[3], net_width, net_width)        # attention1 v proj
    p["wo1"], p["bo1"] = linear(ks[4], net_width, net_width)        # attention1 out proj
    p["w2"], p["b2"] = linear(ks[5], net_width, net_width)          # C2
    p["wq2"], p["bq2"] = linear(ks[6], net_width, net_width)        # attention2 q proj
    p["wk2"], p["bk2"] = linear(ks[7], net_width, net_width)        # attention2 k proj
    p["wv2"], p["bv2"] = linear(ks[8], net_width, net_width)        # attention2 v proj
    p["wo2"], p["bo2"] = linear(ks[9], net_width, net_width)        # attention2 out proj
    p["w3"], p["b3"] = linear(ks[10], net_width, 1)                 # C3
    return p


def critic_reference(state, params):
    """Pure-JAX f32 reference of the *unfolded* torch forward (batch_first=True,
    seq_len == 1 per row), validating both the folding and the bf16 kernel."""
    E = params["w2"].shape[0]
    scale = 1.0 / math.sqrt(E)

    def mha(v, pfx):
        q = v @ params[f"wq{pfx}"] + params[f"bq{pfx}"]
        k = v @ params[f"wk{pfx}"] + params[f"bk{pfx}"]
        val = v @ params[f"wv{pfx}"] + params[f"bv{pfx}"]
        s = jnp.sum(q * k, axis=-1, keepdims=True) * scale
        attn = jax.nn.softmax(s[..., None], axis=-1)[..., 0]  # seq==1 -> ones
        return (attn * val) @ params[f"wo{pfx}"] + params[f"bo{pfx}"]

    v = jnp.tanh(state @ params["w1"] + params["b1"])
    v = mha(v, 1)
    v = jnp.tanh(v @ params["w2"] + params["b2"])
    v = mha(v, 2)
    return v @ params["w3"] + params["b3"]


if __name__ == "__main__":
    state_dim, net_width = 16, 32
    key = jax.random.PRNGKey(0)
    k_state, k_params = jax.random.split(key)

    state = jax.random.normal(k_state, (BATCH, state_dim), jnp.float32)
    params = init_params(k_params, state_dim, net_width)

    # Fold + pack once (parameter-prep time, not per call).
    w_stack, b_stack = pack_params(params)
    w_stack, b_stack = jax.block_until_ready((w_stack, b_stack))

    out_block = critic_forward(state, w_stack, b_stack)   # (10, 128) lane-dense block
    jax.block_until_ready(out_block)
    value = out_block[:, :1]                               # consumer reads column 0

    ref = critic_reference(state, params)
    assert value.shape == (BATCH, 1)
    max_err = float(jnp.max(jnp.abs(value - ref)))
    # bf16 weights/activations with f32 accumulation -> tolerance relaxed vs pure f32.
    assert jnp.allclose(value, ref, atol=1e-2, rtol=1e-2), max_err

    print("KERNEL_OK")
</pallas_src>

<mosaic_0001>
module attributes {stable_mosaic.version = 11 : i64} {
  func.func @critic_kernel(%arg0: memref<10x16xf32, #tpu.memory_space<vmem>>, %arg1: memref<3x128x128xbf16, #tpu.memory_space<vmem>>, %arg2: memref<3x10x128xf32, #tpu.memory_space<vmem>>, %arg3: memref<10x128xf32, #tpu.memory_space<vmem>>) attributes {dimension_semantics = [], scalar_prefetch = 0 : i64, scratch_operands = 0 : i64, tpu.core_type = #tpu.core_type<tc>} {
    %c0 = arith.constant 0 : index
    %c0_0 = arith.constant 0 : index
    %0 = vector.load %arg0[%c0, %c0_0] : memref<10x16xf32, #tpu.memory_space<vmem>>, vector<10x16xf32>
    %1 = arith.truncf %0 : vector<10x16xf32> to vector<10x16xbf16>
    %c0_1 = arith.constant 0 : index
    %c0_2 = arith.constant 0 : index
    %c0_3 = arith.constant 0 : index
    %2 = vector.load %arg1[%c0_1, %c0_2, %c0_3] : memref<3x128x128xbf16, #tpu.memory_space<vmem>>, vector<1x16x128xbf16>
    %3 = vector.shape_cast %2 : vector<1x16x128xbf16> to vector<16x128xbf16>
    %cst = arith.constant dense<0.000000e+00> : vector<10x128xf32>
    %4 = tpu.matmul %1, %3, %cst {dimension_numbers = #tpu.dot_dimension_numbers<[1], [0], [0], [1], [0, 0, 1, 1], [], []>} : vector<10x16xbf16>, vector<16x128xbf16>, vector<10x128xf32> -> vector<10x128xf32>
    %c0_4 = arith.constant 0 : index
    %c0_5 = arith.constant 0 : index
    %c0_6 = arith.constant 0 : index
    %5 = vector.load %arg2[%c0_4, %c0_5, %c0_6] : memref<3x10x128xf32, #tpu.memory_space<vmem>>, vector<1x10x128xf32>
    %6 = vector.shape_cast %5 : vector<1x10x128xf32> to vector<10x128xf32>
    %7 = arith.addf %4, %6 : vector<10x128xf32>
    %8 = math.tanh %7 : vector<10x128xf32>
    %9 = arith.truncf %8 : vector<10x128xf32> to vector<10x128xbf16>
    %c1 = arith.constant 1 : index
    %c0_7 = arith.constant 0 : index
    %c0_8 = arith.constant 0 : index
    %10 = vector.load %arg1[%c1, %c0_7, %c0_8] : memref<3x128x128xbf16, #tpu.memory_space<vmem>>, vector<1x128x128xbf16>
    %11 = vector.shape_cast %10 : vector<1x128x128xbf16> to vector<128x128xbf16>
    %cst_9 = arith.constant dense<0.000000e+00> : vector<10x128xf32>
    %12 = tpu.matmul %9, %11, %cst_9 {dimension_numbers = #tpu.dot_dimension_numbers<[1], [0], [0], [1], [0, 0, 1, 1], [], []>} : vector<10x128xbf16>, vector<128x128xbf16>, vector<10x128xf32> -> vector<10x128xf32>
    %c1_10 = arith.constant 1 : index
    %c0_11 = arith.constant 0 : index
    %c0_12 = arith.constant 0 : index
    %13 = vector.load %arg2[%c1_10, %c0_11, %c0_12] : memref<3x10x128xf32, #tpu.memory_space<vmem>>, vector<1x10x128xf32>
    %14 = vector.shape_cast %13 : vector<1x10x128xf32> to vector<10x128xf32>
    %15 = arith.addf %12, %14 : vector<10x128xf32>
    %16 = math.tanh %15 : vector<10x128xf32>
    %17 = arith.truncf %16 : vector<10x128xf32> to vector<10x128xbf16>
    %c2 = arith.constant 2 : index
    %c0_13 = arith.constant 0 : index
    %c0_14 = arith.constant 0 : index
    %18 = vector.load %arg1[%c2, %c0_13, %c0_14] : memref<3x128x128xbf16, #tpu.memory_space<vmem>>, vector<1x128x128xbf16>
    %19 = vector.shape_cast %18 : vector<1x128x128xbf16> to vector<128x128xbf16>
    %cst_15 = arith.constant dense<0.000000e+00> : vector<10x128xf32>
    %20 = tpu.matmul %17, %19, %cst_15 {dimension_numbers = #tpu.dot_dimension_numbers<[1], [0], [0], [1], [0, 0, 1, 1], [], []>} : vector<10x128xbf16>, vector<128x128xbf16>, vector<10x128xf32> -> vector<10x128xf32>
    %c2_16 = arith.constant 2 : index
    %c0_17 = arith.constant 0 : index
    %c0_18 = arith.constant 0 : index
    %21 = vector.load %arg2[%c2_16, %c0_17, %c0_18] : memref<3x10x128xf32, #tpu.memory_space<vmem>>, vector<1x10x128xf32>
    %22 = vector.shape_cast %21 : vector<1x10x128xf32> to vector<10x128xf32>
    %23 = arith.addf %20, %22 : vector<10x128xf32>
    %c0_19 = arith.constant 0 : index
    %c0_20 = arith.constant 0 : index
    %24 = vector.load %arg3[%c0_19, %c0_20] : memref<10x128xf32, #tpu.memory_space<vmem>>, vector<10x128xf32>
    tpu.vector_store %arg3[%c0_19, %c0_20], %23 {strides = array<i32>} : memref<10x128xf32, #tpu.memory_space<vmem>>, vector<10x128xf32>,
    return
  }
}

</mosaic_0001>

<llo_original>
// kernel: critic_forward.1
$region0: #{critic_forward.1}
  #allocation0 [shape = 'u32[]', space=smem, size = 0x4, offset = 0x4, fixed_abs, tag = 'smem constant byte address 0x4 - core index']
  #allocation1 [shape = 'u32[144,128]{1,0:T(1,128)}', space=vmem, size = 0x12000, scoped, tag = 'internal scratch']
  %s0 = inlined_call_operand.vmem [shape: f32[10,16], index: 0, kind: input, shape index: {}]
  %s1 = inlined_call_operand.hbm [shape: bf16[3,128,128], index: 1, kind: input, shape index: {}]
  %s2 = inlined_call_operand.vmem [shape: f32[3,10,128], index: 2, kind: input, shape index: {}]
  %s3 = inlined_call_operand.hbm [shape: f32[10,128], index: 3, kind: output, shape index: {}]
  %s4 = sld [smem:[#allocation0]]
  $region26: #{critic_forward.1} parent=0
    _
  %s6 = ssub.s32 1, %s4
  %s7 = scalar_select 0, %s6, %s4
  $region1: #{critic_forward.1} parent=0
    #allocation2 [shape = 'u8[98304]{0}', space=vmem, size = 0x18000, scoped, tag = 'input window, operand 1, single buffered']
    #allocation3 [shape = 's32[1]{0}', space=sflag, size = 0x4, scoped, tag = 'scoped memory for critic_forward.1']
    #allocation4 [shape = 's32[1]{0}', space=sflag, size = 0x4, scoped, tag = 'scoped memory for critic_forward.1']
    #allocation5 [shape = 'u8[8192]{0}', space=vmem, size = 0x2000, scoped, tag = 'output window, operand 0, single buffered']
    %8 = vsyncpa [#allocation3], 0
    %9 = vsyncpa [#allocation4], 0
    // Predicated region
    $region2: #{critic_forward.1} parent=1 // pred_check
      _
    $region3: #{critic_forward.1} parent=1 // pred_check_branch
      %11 = sbr.rel (0) target = $region5
    $region4: #{critic_forward.1} parent=1 // pred_region
      _
    $region5: #{critic_forward.1} parent=1 // pred_fallthru
      _
    // Predicated region
    $region6: #{critic_forward.1} parent=1 // pred_check
      _
    $region7: #{critic_forward.1} parent=1 // pred_check_branch
      %13 = sbr.rel (0) target = $region9
    $region8: #{critic_forward.1} parent=1 // pred_region
      %s15 = ssub.s32 3072, 3072
      %16 = vsyncadd [#allocation3], %s15
      %s17 = sshll.u32 [#allocation2], 4
      %s18 = int_to_ptr.vmem [resolvable:$true] %s17
      %23 = dma.hbm_to_vmem [thread:$0]  %s1, 3072, %s18, [#allocation3], 64, 64, 4
    $region9: #{critic_forward.1} parent=1 // pred_fallthru
      _
    // Predicated region
    $region10: #{critic_forward.1} parent=1 // pred_check
      _
    $region11: #{critic_forward.1} parent=1 // pred_check_branch
      %25 = sbr.rel (0) target = $region13
    $region12: #{critic_forward.1} parent=1 // pred_region
      _
    $region13: #{critic_forward.1} parent=1 // pred_fallthru
      _
    // Predicated region
    $region14: #{critic_forward.1} parent=1 // pred_check
      _
    $region15: #{critic_forward.1} parent=1 // pred_check_branch
      %27 = sbr.rel (0) target = $region17
    $region16: #{critic_forward.1} parent=1 // pred_region
      %28 = dma.done [#allocation3], 3072
    $region17: #{critic_forward.1} parent=1 // pred_fallthru
      _
    %v30 = vld [vmem:[%s0] sm:$0xff]
    %v31 = vld [vmem:[%s0 + $0x8] sm:$0x3]
    %v32 = vpack.c.bf16 %v31, %v30
    %v33 = vld [vmem:[#allocation2] sm:$0xf]
    %v34 = vld [vmem:[#allocation2 + $0x4] sm:$0xf]
    %v35 = vld [vmem:[%s2] sm:$0xff]
    %v36 = vld [vmem:[%s2 + $0x8] sm:$0x3]
    %v39 = vunpack.c.l.b16 %v33
    %v40 = vunpack.c.l.b16 %v34
    %v41 = vpack.c.b16 %v40, %v39
    %vm43 = vcmask 130048
    %v45 = vsel %vm43, %v32, 0
    %47 = vmatprep.subr.bf16.mxu0 0
    %48 = vmatpush1.bf16.msra.mxu0 0
    %49 = vmatprep.subr.bf16.mxu0 0
    %50 = vmatpush1.bf16.msra.mxu0 0
    %51 = vmatprep.subr.bf16.mxu0 0
    %52 = vmatpush1.bf16.msra.mxu0 0
    %53 = vmatprep.subr.bf16.mxu0 0
    %54 = vmatpush1.bf16.msra.mxu0 0
    %55 = vmatprep.subr.bf16.mxu0 0
    %56 = vmatpush1.bf16.msra.mxu0 0
    %57 = vmatprep.subr.bf16.mxu0 0
    %58 = vmatpush1.bf16.msra.mxu0 0
    %59 = vmatprep.subr.bf16.mxu0 0
    %60 = vmatpush1.bf16.msra.mxu0 0
    %61 = vmatprep.subr.bf16.mxu0 0
    %62 = vmatpush1.bf16.msra.mxu0 %v41
    %63 = vmatprep.subr.bf16.mxu0 0
    %64 = vmatpush2.bf16.msra.mxu0 0
    %65 = vmatprep.subr.bf16.mxu0 0
    %66 = vmatpush2.bf16.msra.mxu0 0
    %67 = vmatprep.subr.bf16.mxu0 0
    %68 = vmatpush2.bf16.msra.mxu0 0
    %69 = vmatprep.subr.bf16.mxu0 0
    %70 = vmatpush2.bf16.msra.mxu0 0
    %71 = vmatprep.subr.bf16.mxu0 0
    %72 = vmatpush2.bf16.msra.mxu0 0
    %73 = vmatprep.subr.bf16.mxu0 0
    %74 = vmatpush2.bf16.msra.mxu0 0
    %75 = vmatprep.subr.bf16.mxu0 0
    %76 = vmatpush2.bf16.msra.mxu0 0
    %77 = vmatprep.subr.bf16.mxu0 0
    %78 = vmatpush2.bf16.msra.mxu0 0
    %79 = vmatprep.mubr.bf16.mxu0 0
    %80 = vmatmul.mubr.bf16.gmra.mxu0 %v45
    %v81 = vpop.f32.mrf.mxu0
    %v82 = vadd.f32 %v35, %v81
    %v83 = vpop.f32.mrf.mxu0
    %v84 = vpop.f32.mrf.mxu0
    %v85 = vadd.f32 %v36, %v84
    %v86 = vpop.f32.mrf.mxu0
    %87 = vdwg.mxu0
    %v88 = vtanh.pop %v82
    %v89 = vtanh.pop %v85
    %v90 = vpack.c.bf16 %v89, %v88
    %s91 = scalar_lea.vmem [#allocation2], 64
    %v92 = vld [vmem:[%s91] sm:$0xf]
    %v93 = vld [vmem:[%s91 + $0x4] sm:$0xf]
    %v94 = vld [vmem:[%s91 + $0x8] sm:$0xf]
    %v95 = vld [vmem:[%s91 + $0xc] sm:$0xf]
    %v96 = vld [vmem:[%s91 + $0x10] sm:$0xf]
    %v97 = vld [vmem:[%s91 + $0x14] sm:$0xf]
    %v98 = vld [vmem:[%s91 + $0x18] sm:$0xf]
    %v99 = vld [vmem:[%s91 + $0x1c] sm:$0xf]
    %v100 = vld [vmem:[%s91 + $0x20] sm:$0xf]
    %v101 = vld [vmem:[%s91 + $0x24] sm:$0xf]
    %v102 = vld [vmem:[%s91 + $0x28] sm:$0xf]
    %v103 = vld [vmem:[%s91 + $0x2c] sm:$0xf]
    %v104 = vld [vmem:[%s91 + $0x30] sm:$0xf]
    %v105 = vld [vmem:[%s91 + $0x34] sm:$0xf]
    %v106 = vld [vmem:[%s91 + $0x38] sm:$0xf]
    %v107 = vld [vmem:[%s91 + $0x3c] sm:$0xf]
    %s108 = scalar_lea.vmem %s2, 16
    %v109 = vld [vmem:[%s108] sm:$0xff]
    %v110 = vld [vmem:[%s108 + $0x8] sm:$0x3]
    %v127 = vunpack.c.l.b16 %v92
    %v128 = vunpack.c.l.b16 %v93
    %v129 = vunpack.c.l.b16 %v94
    %v130 = vunpack.c.l.b16 %v95
    %v131 = vunpack.c.l.b16 %v96
    %v132 = vunpack.c.l.b16 %v97
    %v133 = vunpack.c.l.b16 %v98
    %v134 = vunpack.c.l.b16 %v99
    %v135 = vunpack.c.l.b16 %v100
    %v136 = vunpack.c.l.b16 %v101
    %v137 = vunpack.c.l.b16 %v102
    %v138 = vunpack.c.l.b16 %v103
    %v139 = vunpack.c.l.b16 %v104
    %v140 = vunpack.c.l.b16 %v105
    %v141 = vunpack.c.l.b16 %v106
    %v142 = vunpack.c.l.b16 %v107
    %v143 = vpack.c.b16 %v128, %v127
    %v144 = vpack.c.b16 %v130, %v129
    %v145 = vpack.c.b16 %v132, %v131
    %v146 = vpack.c.b16 %v134, %v133
    %v147 = vpack.c.b16 %v136, %v135
    %v148 = vpack.c.b16 %v138, %v137
    %v149 = vpack.c.b16 %v140, %v139
    %v150 = vpack.c.b16 %v142, %v141
    %159 = vmatprep.subr.bf16.mxu0 0
    %160 = vmatpush1.bf16.msra.mxu0 %v150
    %161 = vmatprep.subr.bf16.mxu0 0
    %162 = vmatpush1.bf16.msra.mxu0 %v149
    %163 = vmatprep.subr.bf16.mxu0 0
    %164 = vmatpush1.bf16.msra.mxu0 %v148
    %165 = vmatprep.subr.bf16.mxu0 0
    %166 = vmatpush1.bf16.msra.mxu0 %v147
    %167 = vmatprep.subr.bf16.mxu0 0
    %168 = vmatpush1.bf16.msra.mxu0 %v146
    %169 = vmatprep.subr.bf16.mxu0 0
    %170 = vmatpush1.bf16.msra.mxu0 %v145
    %171 = vmatprep.subr.bf16.mxu0 0
    %172 = vmatpush1.bf16.msra.mxu0 %v144
    %173 = vmatprep.subr.bf16.mxu0 0
    %174 = vmatpush1.bf16.msra.mxu0 %v143
    %175 = vmatprep.subr.bf16.mxu0 0
    %176 = vmatpush2.bf16.msra.mxu0 0
    %177 = vmatprep.subr.bf16.mxu0 0
    %178 = vmatpush2.bf16.msra.mxu0 0
    %179 = vmatprep.subr.bf16.mxu0 0
    %180 = vmatpush2.bf16.msra.mxu0 0
    %181 = vmatprep.subr.bf16.mxu0 0
    %182 = vmatpush2.bf16.msra.mxu0 0
    %183 = vmatprep.subr.bf16.mxu0 0
    %184 = vmatpush2.bf16.msra.mxu0 0
    %185 = vmatprep.subr.bf16.mxu0 0
    %186 = vmatpush2.bf16.msra.mxu0 0
    %187 = vmatprep.subr.bf16.mxu0 0
    %188 = vmatpush2.bf16.msra.mxu0 0
    %189 = vmatprep.subr.bf16.mxu0 0
    %190 = vmatpush2.bf16.msra.mxu0 0
    %191 = vmatprep.mubr.bf16.mxu0 0
    %192 = vmatmul.mubr.bf16.gmra.mxu0 %v90
    %v193 = vpop.f32.mrf.mxu0
    %v194 = vadd.f32 %v109, %v193
    %v195 = vpop.f32.mrf.mxu0
    %v196 = vpop.f32.mrf.mxu0
    %v197 = vadd.f32 %v110, %v196
    %v198 = vpop.f32.mrf.mxu0
    %199 = vdwg.mxu0
    %v200 = vtanh.pop %v194
    %v201 = vtanh.pop %v197
    %v202 = vpack.c.bf16 %v201, %v200
    %s203 = scalar_lea.vmem [#allocation2], 128
    %v204 = vld [vmem:[%s203] sm:$0xf]
    %v205 = vld [vmem:[%s203 + $0x4] sm:$0xf]
    %v206 = vld [vmem:[%s203 + $0x8] sm:$0xf]
    %v207 = vld [vmem:[%s203 + $0xc] sm:$0xf]
    %v208 = vld [vmem:[%s203 + $0x10] sm:$0xf]
    %v209 = vld [vmem:[%s203 + $0x14] sm:$0xf]
    %v210 = vld [vmem:[%s203 + $0x18] sm:$0xf]
    %v211 = vld [vmem:[%s203 + $0x1c] sm:$0xf]
    %v212 = vld [vmem:[%s203 + $0x20] sm:$0xf]
    %v213 = vld [vmem:[%s203 + $0x24] sm:$0xf]
    %v214 = vld [vmem:[%s203 + $0x28] sm:$0xf]
    %v215 = vld [vmem:[%s203 + $0x2c] sm:$0xf]
    %v216 = vld [vmem:[%s203 + $0x30] sm:$0xf]
    %v217 = vld [vmem:[%s203 + $0x34] sm:$0xf]
    %v218 = vld [vmem:[%s203 + $0x38] sm:$0xf]
    %v219 = vld [vmem:[%s203 + $0x3c] sm:$0xf]
    %s220 = scalar_lea.vmem %s2, 32
    %v221 = vld [vmem:[%s220] sm:$0xff]
    %v222 = vld [vmem:[%s220 + $0x8] sm:$0x3]
    %v239 = vunpack.c.l.b16 %v204
    %v240 = vunpack.c.l.b16 %v205
    %v241 = vunpack.c.l.b16 %v206
    %v242 = vunpack.c.l.b16 %v207
    %v243 = vunpack.c.l.b16 %v208
    %v244 = vunpack.c.l.b16 %v209
    %v245 = vunpack.c.l.b16 %v210
    %v246 = vunpack.c.l.b16 %v211
    %v247 = vunpack.c.l.b16 %v212
    %v248 = vunpack.c.l.b16 %v213
    %v249 = vunpack.c.l.b16 %v214
    %v250 = vunpack.c.l.b16 %v215
    %v251 = vunpack.c.l.b16 %v216
    %v252 = vunpack.c.l.b16 %v217
    %v253 = vunpack.c.l.b16 %v218
    %v254 = vunpack.c.l.b16 %v219
    %v255 = vpack.c.b16 %v240, %v239
    %v256 = vpack.c.b16 %v242, %v241
    %v257 = vpack.c.b16 %v244, %v243
    %v258 = vpack.c.b16 %v246, %v245
    %v259 = vpack.c.b16 %v248, %v247
    %v260 = vpack.c.b16 %v250, %v249
    %v261 = vpack.c.b16 %v252, %v251
    %v262 = vpack.c.b16 %v254, %v253
    %271 = vmatprep.subr.bf16.mxu0 0
    %272 = vmatpush1.bf16.msra.mxu0 %v262
    %273 = vmatprep.subr.bf16.mxu0 0
    %274 = vmatpush1.bf16.msra.mxu0 %v261
    %275 = vmatprep.subr.bf16.mxu0 0
    %276 = vmatpush1.bf16.msra.mxu0 %v260
    %277 = vmatprep.subr.bf16.mxu0 0
    %278 = vmatpush1.bf16.msra.mxu0 %v259
    %279 = vmatprep.subr.bf16.mxu0 0
    %280 = vmatpush1.bf16.msra.mxu0 %v258
    %281 = vmatprep.subr.bf16.mxu0 0
    %282 = vmatpush1.bf16.msra.mxu0 %v257
    %283 = vmatprep.subr.bf16.mxu0 0
    %284 = vmatpush1.bf16.msra.mxu0 %v256
    %285 = vmatprep.subr.bf16.mxu0 0
    %286 = vmatpush1.bf16.msra.mxu0 %v255
    %287 = vmatprep.subr.bf16.mxu0 0
    %288 = vmatpush2.bf16.msra.mxu0 0
    %289 = vmatprep.subr.bf16.mxu0 0
    %290 = vmatpush2.bf16.msra.mxu0 0
    %291 = vmatprep.subr.bf16.mxu0 0
    %292 = vmatpush2.bf16.msra.mxu0 0
    %293 = vmatprep.subr.bf16.mxu0 0
    %294 = vmatpush2.bf16.msra.mxu0 0
    %295 = vmatprep.subr.bf16.mxu0 0
    %296 = vmatpush2.bf16.msra.mxu0 0
    %297 = vmatprep.subr.bf16.mxu0 0
    %298 = vmatpush2.bf16.msra.mxu0 0
    %299 = vmatprep.subr.bf16.mxu0 0
    %300 = vmatpush2.bf16.msra.mxu0 0
    %301 = vmatprep.subr.bf16.mxu0 0
    %302 = vmatpush2.bf16.msra.mxu0 0
    %303 = vmatprep.mubr.bf16.mxu0 0
    %304 = vmatmul.mubr.bf16.gmra.mxu0 %v202
    %v305 = vpop.f32.mrf.mxu0
    %v306 = vadd.f32 %v221, %v305
    %v307 = vpop.f32.mrf.mxu0
    %v308 = vpop.f32.mrf.mxu0
    %v309 = vadd.f32 %v222, %v308
    %v310 = vpop.f32.mrf.mxu0
    %311 = vdwg.mxu0
    %312 = vst [vmem:[#allocation5] sm:$0xff] %v306
    %313 = vst [vmem:[#allocation5 + $0x8] sm:$0x3] %v309
    // Predicated region
    $region18: #{critic_forward.1} parent=1 // pred_check
      _
    $region19: #{critic_forward.1} parent=1 // pred_check_branch
      %315 = sbr.rel (0) target = $region21
    $region20: #{critic_forward.1} parent=1 // pred_region
      %s317 = ssub.s32 256, 256
      %318 = vsyncadd [#allocation4], %s317
      %s319 = sshll.u32 [#allocation5], 4
      %s320 = int_to_ptr.vmem [resolvable:$true] %s319
      %325 = dma.vmem_to_hbm [thread:$0]  %s320, 256, %s3, [#allocation4], 128, 128, 8
    $region21: #{critic_forward.1} parent=1 // pred_fallthru
      _
    // Predicated region
    $region22: #{critic_forward.1} parent=1 // pred_check
      _
    $region23: #{critic_forward.1} parent=1 // pred_check_branch
      %327 = sbr.rel (0) target = $region25
    $region24: #{critic_forward.1} parent=1 // pred_region
      %328 = dma.done [#allocation4], 256
    $region25: #{critic_forward.1} parent=1 // pred_fallthru
      _
    %329 = vsyncpa [#allocation3], 1
    %330 = vsyncpa [#allocation4], 1

</llo_original>
